<compile_context>
chip_gen: v6e
topology: v6e:2x2x1
jax: 0.10.0
libtpu: 0.0.40
codegen_flags: <defaults>
</compile_context>

<pallas_src>
import functools

import jax
import jax.numpy as jnp
from jax.experimental import pallas as pl
from jax.experimental.pallas import tpu as pltpu


# ----------------------------------------------------------------------------
# Kernel
# ----------------------------------------------------------------------------
def _pool_kernel(x_ref, max_ref, ssum_ref, ssq_ref, shift_ref,
                 max_acc, ssum_acc, ssq_acc, shift_acc,
                 *, hw, tile, tpp, needs_mask):
    """Streaming per-channel max / shifted-sum / shifted-sumsq over one
    spatial partition.

    x_ref block: (bb, C, tile); outputs (per partition): four (1, bb, C)
    blocks -- max, sum(x - c), sum((x - c)^2), and the shift c.
    """
    s = pl.program_id(0)
    j = pl.program_id(2)

    @pl.when(j == 0)
    def _init():
        # Shift = first (always-valid) element of this partition, per channel.
        # Makes the single-pass sum-of-squares robust to a large DC mean.
        shift_acc[...] = x_ref[:, :, 0:1].astype(jnp.float32)
        max_acc[...] = jnp.full(max_acc.shape, -jnp.inf, dtype=max_acc.dtype)
        ssum_acc[...] = jnp.zeros(ssum_acc.shape, dtype=ssum_acc.dtype)
        ssq_acc[...] = jnp.zeros(ssq_acc.shape, dtype=ssq_acc.dtype)

    x = x_ref[...].astype(jnp.float32)            # (bb, C, tile)
    c = shift_acc[...]                            # (bb, C, 1)
    xs = x - c

    def _accum(xm, xsm):
        max_acc[...] = jnp.maximum(max_acc[...], jnp.max(xm, axis=-1))
        ssum_acc[...] = ssum_acc[...] + jnp.sum(xsm, axis=-1)
        ssq_acc[...] = ssq_acc[...] + jnp.sum(xsm * xsm, axis=-1)

    if needs_mask:
        # Global (unclamped) start of this tile; masking only runs for tiles
        # that extend past H*W (ragged tail or clamped duplicate tiles), so
        # the hot path stays free of iota/compare/select work.
        g0 = (s * tpp + j) * tile
        is_full = (g0 + tile) <= hw

        @pl.when(is_full)
        def _unmasked():
            _accum(x, xs)

        @pl.when(jnp.logical_not(is_full))
        def _masked():
            pos = g0 + jax.lax.broadcasted_iota(jnp.int32, x.shape, 2)
            valid = pos < hw
            _accum(jnp.where(valid, x, -jnp.inf), jnp.where(valid, xs, 0.0))
    else:
        _accum(x, xs)

    @pl.when(j == pl.num_programs(2) - 1)
    def _finalize():
        max_ref[0] = max_acc[...]
        ssum_ref[0] = ssum_acc[...]
        ssq_ref[0] = ssq_acc[...]
        shift_ref[0] = shift_acc[...][:, :, 0]


# ----------------------------------------------------------------------------
# Planning (generation-aware block sizing)
# ----------------------------------------------------------------------------
def _vmem_plan():
    """Returns (per_input_buffer_budget_bytes, vmem_limit_bytes)."""
    cap = None
    try:
        cap = getattr(pltpu.get_tpu_info(), "vmem_capacity_bytes", None)
    except Exception:
        cap = None
    if not cap:
        cap = 64 * 1024 * 1024                    # conservative (v7x-sized)
    if cap >= 128 * 1024 * 1024:                  # v5e / v6e (128 MiB VMEM)
        return 16 * 1024 * 1024, 64 * 1024 * 1024
    return 12 * 1024 * 1024, 44 * 1024 * 1024     # v7x (64 MiB VMEM per TC)


def _plan(B, C, HW, itemsize, spatial_tile, batch_block, per_buf_budget):
    """Pick (tile, num_tiles, S, tiles_per_partition, batch_block)."""
    # Spatial (lane) tile first -- no artificial cap, multiple of 128 or HW.
    if spatial_tile is not None:
        tile = int(spatial_tile)
        assert tile >= HW or tile % 128 == 0, \
            "spatial_tile must be a multiple of 128 or cover all of H*W"
    else:
        lane_budget = max(128, per_buf_budget // max(1, C * itemsize))
        tile = HW if HW <= lane_budget else max(128, (lane_budget // 128) * 128)
    num_tiles = int(pl.cdiv(HW, tile))

    # If a single tile covers everything but there is enough work, split it so
    # the parallel grid axes get >= 2 iterations (v7x dual-TensorCore).
    if spatial_tile is None and num_tiles == 1 and HW >= 256:
        tile = max(128, (((HW + 1) // 2) + 127) // 128 * 128)
        num_tiles = int(pl.cdiv(HW, tile))

    S = 2 if num_tiles >= 2 else 1
    tpp = int(pl.cdiv(num_tiles, S))

    # Batch block: whatever still fits next to the chosen spatial tile.
    padded_tile = ((tile + 127) // 128) * 128
    per_batch_bytes = C * padded_tile * itemsize
    if batch_block is not None:
        bb = int(batch_block)
        assert B % bb == 0
    else:
        bb_max = max(1, per_buf_budget // per_batch_bytes)
        bb = 1
        for d in range(B, 0, -1):
            if B % d == 0 and d <= bb_max:
                bb = d
                break
    return tile, num_tiles, S, tpp, bb


# ----------------------------------------------------------------------------
# Wrapper
# ----------------------------------------------------------------------------
def channel_attention_pooled(x, *, spatial_tile=None, batch_block=None):
    """Per-channel (max, mean + std) over the spatial dims. Returns two (B, C)."""
    B, C, H, W = x.shape
    HW = H * W
    xf = x.reshape(B, C, HW)                      # lane-dense layout
    itemsize = jnp.dtype(x.dtype).itemsize

    per_buf_budget, vmem_limit = _vmem_plan()
    tile, num_tiles, S, tpp, bb = _plan(
        B, C, HW, itemsize, spatial_tile, batch_block, per_buf_budget)
    needs_mask = (S * tpp * tile != HW)

    if S * tpp > num_tiles:
        # Odd tile count split across 2 partitions: clamp so the DMA never
        # goes out of bounds; the duplicate tile is fully masked in-kernel.
        def x_index_map(s, b, j):
            return (b, 0, jnp.minimum(s * tpp + j, num_tiles - 1))
    else:
        def x_index_map(s, b, j):
            return (b, 0, s * tpp + j)

    def out_index_map(s, b, j):
        return (s, b, 0)

    kernel = functools.partial(_pool_kernel, hw=HW, tile=tile, tpp=tpp,
                               needs_mask=needs_mask)

    cost = pl.CostEstimate(
        flops=5 * B * C * HW,
        transcendentals=0,
        bytes_accessed=B * C * HW * itemsize + 4 * S * B * C * 4,
    )

    out_shape = tuple(jax.ShapeDtypeStruct((S, B, C), jnp.float32)
                      for _ in range(4))
    mx_p, ssum_p, ssq_p, shift_p = pl.pallas_call(
        kernel,
        out_shape=out_shape,
        grid_spec=pltpu.PrefetchScalarGridSpec(
            num_scalar_prefetch=0,
            grid=(S, B // bb, tpp),
            in_specs=[pl.BlockSpec((bb, C, tile), x_index_map)],
            out_specs=[pl.BlockSpec((1, bb, C), out_index_map)
                       for _ in range(4)],
            scratch_shapes=[
                pltpu.VMEM((bb, C), jnp.float32),      # running max
                pltpu.VMEM((bb, C), jnp.float32),      # running shifted sum
                pltpu.VMEM((bb, C), jnp.float32),      # running shifted sumsq
                pltpu.VMEM((bb, C, 1), jnp.float32),   # per-partition shift
            ],
        ),
        compiler_params=pltpu.CompilerParams(
            dimension_semantics=("parallel", "parallel", "arbitrary"),
            vmem_limit_bytes=vmem_limit,
        ),
        cost_estimate=cost,
    )(xf)

    # Exact cross-partition merge (Chan parallel mean/variance merge).  All of
    # this is (S, B, C)-sized -- negligible, handled by XLA.
    counts = []
    for s_idx in range(S):
        start = s_idx * tpp * tile
        end = min(HW, (s_idx + 1) * tpp * tile)
        counts.append(float(max(end - start, 0)))
    n = jnp.asarray(counts, jnp.float32).reshape(S, 1, 1)

    mean_s = shift_p + ssum_p / n                               # partition mean
    m2_s = jnp.maximum(ssq_p - (ssum_p * ssum_p) / n, 0.0)      # partition M2
    mean = jnp.sum(n * mean_s, axis=0) / float(HW)              # (B, C)
    m2 = (jnp.sum(m2_s, axis=0)
          + jnp.sum(n * (mean_s - mean[None]) ** 2, axis=0))
    var = jnp.maximum(m2 / float(HW), 0.0)                      # population var
    std = jnp.sqrt(var)

    mx = jnp.max(mx_p, axis=0)                                  # (B, C)
    avg = mean + std
    return mx, avg


def channel_attention(x, w1, b1, w2, b2, *, spatial_tile=None, batch_block=None):
    """ChannelAttention forward.

    x:  (B, C, H, W)
    w1: (C//r, C), b1: (C//r,)   (first 1x1 conv of the SE block)
    w2: (C, C//r), b2: (C,)      (second 1x1 conv of the SE block)
    Returns (B, C, 1, 1) attention weights.
    """
    B, C = x.shape[0], x.shape[1]
    mx, avg = channel_attention_pooled(x, spatial_tile=spatial_tile,
                                       batch_block=batch_block)
    # SE block (1x1 convs == dense over channels) + sigmoid, batched over all
    # B and both pooled vectors in plain JAX (hoisted out of the kernel).
    v = jnp.concatenate([mx, avg], axis=0)            # (2B, C)
    h = jnp.maximum(v @ w1.T + b1[None, :], 0.0)      # (2B, C//r)
    o = h @ w2.T + b2[None, :]                        # (2B, C)
    out = jax.nn.sigmoid(o[:B] + o[B:])               # (B, C)
    return out.reshape(B, C, 1, 1)


# ----------------------------------------------------------------------------
# Reference + tests
# ----------------------------------------------------------------------------
def _reference_pooled(x):
    mean = x.mean(axis=(2, 3))
    var = ((x - mean[:, :, None, None]) ** 2).mean(axis=(2, 3))
    std = jnp.sqrt(var)
    mx = x.max(axis=(2, 3))
    return mx, mean + std


def _reference(x, w1, b1, w2, b2):
    mx, avg = _reference_pooled(x)

    def se(v):
        h = jnp.maximum(v @ w1.T + b1[None, :], 0.0)
        return h @ w2.T + b2[None, :]

    out = jax.nn.sigmoid(se(mx) + se(avg))
    return out.reshape(x.shape[0], x.shape[1], 1, 1)


if __name__ == "__main__":
    key = jax.random.PRNGKey(0)
    kx, k1, k2, k3, k4, kx2, kx3, kx4 = jax.random.split(key, 8)

    reduction = 4
    B, C = 2, 32
    Cr = C // reduction
    w1 = jax.random.normal(k1, (Cr, C), dtype=jnp.float32) * 0.1
    b1 = jax.random.normal(k2, (Cr,), dtype=jnp.float32) * 0.1
    w2 = jax.random.normal(k3, (C, Cr), dtype=jnp.float32) * 0.1
    b2 = jax.random.normal(k4, (C,), dtype=jnp.float32) * 0.1

    def check(x, **kw):
        mx, avg = jax.block_until_ready(channel_attention_pooled(x, **kw))
        rmx, ravg = _reference_pooled(x)
        assert jnp.allclose(mx, rmx, atol=1e-4, rtol=1e-5), "max-pool mismatch"
        assert jnp.allclose(avg, ravg, atol=1e-3, rtol=1e-4), "mean+std mismatch"
        out = jax.block_until_ready(channel_attention(x, w1, b1, w2, b2, **kw))
        ref = _reference(x, w1, b1, w2, b2)
        assert out.shape == (x.shape[0], x.shape[1], 1, 1)
        assert jnp.allclose(out, ref, atol=1e-5, rtol=1e-4), "output mismatch"

    # Test 1: 16x16, auto tiling (even spatial split across 2 partitions,
    # no masking needed anywhere).
    x1 = jax.random.normal(kx, (B, C, 16, 16), dtype=jnp.float32)
    check(x1)

    # Test 2: ragged 20x20 (=400) with a forced 256-wide tile: two uneven
    # partitions, masked tail tile, exact cross-partition merge.
    x2 = jax.random.normal(kx2, (B, C, 20, 20), dtype=jnp.float32)
    check(x2, spatial_tile=256)

    # Test 3: 24x24 (=576) with a +100 DC offset and a forced 256-wide tile:
    # odd tile count -> clamped duplicate tile on the second partition, plus
    # the shifted sum-of-squares path (cancellation robustness).
    x3 = jax.random.normal(kx3, (B, C, 24, 24), dtype=jnp.float32) + 100.0
    check(x3, spatial_tile=256)

    # Test 4: odd batch, tiny non-128-multiple spatial extent (single full
    # tile, single partition, fully unmasked path).
    x4 = jax.random.normal(kx4, (3, C, 15, 15), dtype=jnp.float32)
    check(x4)

    print("KERNEL_OK")
</pallas_src>

<mosaic_0001>
module attributes {stable_mosaic.version = 11 : i64} {
  func.func @_pool_kernel(%arg0: i32, %arg1: i32, %arg2: i32, %arg3: memref<2x32x128xf32, #tpu.memory_space<vmem>>, %arg4: memref<1x2x32xf32, #tpu.memory_space<vmem>>, %arg5: memref<1x2x32xf32, #tpu.memory_space<vmem>>, %arg6: memref<1x2x32xf32, #tpu.memory_space<vmem>>, %arg7: memref<1x2x32xf32, #tpu.memory_space<vmem>>, %arg8: memref<2x32xf32, #tpu.memory_space<vmem>>, %arg9: memref<2x32xf32, #tpu.memory_space<vmem>>, %arg10: memref<2x32xf32, #tpu.memory_space<vmem>>, %arg11: memref<2x32x1xf32, #tpu.memory_space<vmem>>) attributes {dimension_semantics = [#tpu.dimension_semantics<parallel>, #tpu.dimension_semantics<parallel>, #tpu.dimension_semantics<arbitrary>], iteration_bounds = array<i64: 2, 1, 1>, scalar_prefetch = 0 : i64, scratch_operands = 4 : i64, tpu.core_type = #tpu.core_type<tc>, window_params = [{transform_indices = @transform_0, window_bounds = array<i64: 2, 32, 128>}, {transform_indices = @transform_1, window_bounds = array<i64: 1, 2, 32>}, {transform_indices = @transform_2, window_bounds = array<i64: 1, 2, 32>}, {transform_indices = @transform_3, window_bounds = array<i64: 1, 2, 32>}, {transform_indices = @transform_4, window_bounds = array<i64: 1, 2, 32>}]} {
    %c0_i32 = arith.constant 0 : i32
    %0 = arith.cmpi eq, %arg2, %c0_i32 : i32
    %1 = arith.extui %0 : i1 to i32
    %c0_i32_0 = arith.constant 0 : i32
    %2 = arith.cmpi ne, %1, %c0_i32_0 : i32
    scf.if %2 {
      %c0_22 = arith.constant 0 : index
      %c0_23 = arith.constant 0 : index
      %c0_24 = arith.constant 0 : index
      %23 = vector.load %arg3[%c0_22, %c0_23, %c0_24] : memref<2x32x128xf32, #tpu.memory_space<vmem>>, vector<2x32x1xf32>
      %c0_25 = arith.constant 0 : index
      %c0_26 = arith.constant 0 : index
      %c0_27 = arith.constant 0 : index
      %24 = vector.load %arg11[%c0_25, %c0_26, %c0_27] : memref<2x32x1xf32, #tpu.memory_space<vmem>>, vector<2x32x1xf32>
      tpu.vector_store %arg11[%c0_25, %c0_26, %c0_27], %23 {strides = array<i32>} : memref<2x32x1xf32, #tpu.memory_space<vmem>>, vector<2x32x1xf32>,
      %cst_28 = arith.constant 0xFF800000 : f32
      %25 = vector.broadcast %cst_28 : f32 to vector<2x32xf32>
      %c0_29 = arith.constant 0 : index
      %c0_30 = arith.constant 0 : index
      %26 = vector.load %arg8[%c0_29, %c0_30] : memref<2x32xf32, #tpu.memory_space<vmem>>, vector<2x32xf32>
      tpu.vector_store %arg8[%c0_29, %c0_30], %25 {strides = array<i32>} : memref<2x32xf32, #tpu.memory_space<vmem>>, vector<2x32xf32>,
      %cst_31 = arith.constant 0.000000e+00 : f32
      %27 = vector.broadcast %cst_31 : f32 to vector<2x32xf32>
      %c0_32 = arith.constant 0 : index
      %c0_33 = arith.constant 0 : index
      %28 = vector.load %arg9[%c0_32, %c0_33] : memref<2x32xf32, #tpu.memory_space<vmem>>, vector<2x32xf32>
      tpu.vector_store %arg9[%c0_32, %c0_33], %27 {strides = array<i32>} : memref<2x32xf32, #tpu.memory_space<vmem>>, vector<2x32xf32>,
      %cst_34 = arith.constant 0.000000e+00 : f32
      %29 = vector.broadcast %cst_34 : f32 to vector<2x32xf32>
      %c0_35 = arith.constant 0 : index
      %c0_36 = arith.constant 0 : index
      %30 = vector.load %arg10[%c0_35, %c0_36] : memref<2x32xf32, #tpu.memory_space<vmem>>, vector<2x32xf32>
      tpu.vector_store %arg10[%c0_35, %c0_36], %29 {strides = array<i32>} : memref<2x32xf32, #tpu.memory_space<vmem>>, vector<2x32xf32>,
    } else {
    }
    %c0 = arith.constant 0 : index
    %c0_1 = arith.constant 0 : index
    %c0_2 = arith.constant 0 : index
    %3 = vector.load %arg3[%c0, %c0_1, %c0_2] : memref<2x32x128xf32, #tpu.memory_space<vmem>>, vector<2x32x128xf32>
    %c0_3 = arith.constant 0 : index
    %c0_4 = arith.constant 0 : index
    %c0_5 = arith.constant 0 : index
    %4 = vector.load %arg11[%c0_3, %c0_4, %c0_5] : memref<2x32x1xf32, #tpu.memory_space<vmem>>, vector<2x32x1xf32>
    %5 = vector.broadcast %4 : vector<2x32x1xf32> to vector<2x32x128xf32>
    %6 = arith.subf %3, %5 : vector<2x32x128xf32>
    %c0_6 = arith.constant 0 : index
    %c0_7 = arith.constant 0 : index
    %7 = vector.load %arg8[%c0_6, %c0_7] : memref<2x32xf32, #tpu.memory_space<vmem>>, vector<2x32xf32>
    %cst = arith.constant dense<0xFF800000> : vector<2x32xf32>
    %8 = vector.multi_reduction <maximumf>, %3, %cst [2] : vector<2x32x128xf32> to vector<2x32xf32>
    %9 = arith.maximumf %7, %8 : vector<2x32xf32>
    %c0_8 = arith.constant 0 : index
    %c0_9 = arith.constant 0 : index
    %10 = vector.load %arg8[%c0_8, %c0_9] : memref<2x32xf32, #tpu.memory_space<vmem>>, vector<2x32xf32>
    tpu.vector_store %arg8[%c0_8, %c0_9], %9 {strides = array<i32>} : memref<2x32xf32, #tpu.memory_space<vmem>>, vector<2x32xf32>,
    %c0_10 = arith.constant 0 : index
    %c0_11 = arith.constant 0 : index
    %11 = vector.load %arg9[%c0_10, %c0_11] : memref<2x32xf32, #tpu.memory_space<vmem>>, vector<2x32xf32>
    %cst_12 = arith.constant dense<0.000000e+00> : vector<2x32xf32>
    %12 = vector.multi_reduction <add>, %6, %cst_12 [2] : vector<2x32x128xf32> to vector<2x32xf32>
    %13 = arith.addf %11, %12 : vector<2x32xf32>
    %c0_13 = arith.constant 0 : index
    %c0_14 = arith.constant 0 : index
    %14 = vector.load %arg9[%c0_13, %c0_14] : memref<2x32xf32, #tpu.memory_space<vmem>>, vector<2x32xf32>
    tpu.vector_store %arg9[%c0_13, %c0_14], %13 {strides = array<i32>} : memref<2x32xf32, #tpu.memory_space<vmem>>, vector<2x32xf32>,
    %c0_15 = arith.constant 0 : index
    %c0_16 = arith.constant 0 : index
    %15 = vector.load %arg10[%c0_15, %c0_16] : memref<2x32xf32, #tpu.memory_space<vmem>>, vector<2x32xf32>
    %16 = arith.mulf %6, %6 : vector<2x32x128xf32>
    %cst_17 = arith.constant dense<0.000000e+00> : vector<2x32xf32>
    %17 = vector.multi_reduction <add>, %16, %cst_17 [2] : vector<2x32x128xf32> to vector<2x32xf32>
    %18 = arith.addf %15, %17 : vector<2x32xf32>
    %c0_18 = arith.constant 0 : index
    %c0_19 = arith.constant 0 : index
    %19 = vector.load %arg10[%c0_18, %c0_19] : memref<2x32xf32, #tpu.memory_space<vmem>>, vector<2x32xf32>
    tpu.vector_store %arg10[%c0_18, %c0_19], %18 {strides = array<i32>} : memref<2x32xf32, #tpu.memory_space<vmem>>, vector<2x32xf32>,
    %c0_i32_20 = arith.constant 0 : i32
    %20 = arith.cmpi eq, %arg2, %c0_i32_20 : i32
    %21 = arith.extui %20 : i1 to i32
    %c0_i32_21 = arith.constant 0 : i32
    %22 = arith.cmpi ne, %21, %c0_i32_21 : i32
    scf.if %22 {
      %c0_22 = arith.constant 0 : index
      %c0_23 = arith.constant 0 : index
      %23 = vector.load %arg8[%c0_22, %c0_23] : memref<2x32xf32, #tpu.memory_space<vmem>>, vector<2x32xf32>
      %c0_24 = arith.constant 0 : index
      %c0_25 = arith.constant 0 : index
      %c0_26 = arith.constant 0 : index
      %24 = vector.load %arg4[%c0_24, %c0_25, %c0_26] : memref<1x2x32xf32, #tpu.memory_space<vmem>>, vector<1x2x32xf32>
      %25 = vector.shape_cast %24 : vector<1x2x32xf32> to vector<2x32xf32>
      %26 = vector.shape_cast %23 : vector<2x32xf32> to vector<1x2x32xf32>
      tpu.vector_store %arg4[%c0_24, %c0_25, %c0_26], %26 {strides = array<i32>} : memref<1x2x32xf32, #tpu.memory_space<vmem>>, vector<1x2x32xf32>,
      %c0_27 = arith.constant 0 : index
      %c0_28 = arith.constant 0 : index
      %27 = vector.load %arg9[%c0_27, %c0_28] : memref<2x32xf32, #tpu.memory_space<vmem>>, vector<2x32xf32>
      %c0_29 = arith.constant 0 : index
      %c0_30 = arith.constant 0 : index
      %c0_31 = arith.constant 0 : index
      %28 = vector.load %arg5[%c0_29, %c0_30, %c0_31] : memref<1x2x32xf32, #tpu.memory_space<vmem>>, vector<1x2x32xf32>
      %29 = vector.shape_cast %28 : vector<1x2x32xf32> to vector<2x32xf32>
      %30 = vector.shape_cast %27 : vector<2x32xf32> to vector<1x2x32xf32>
      tpu.vector_store %arg5[%c0_29, %c0_30, %c0_31], %30 {strides = array<i32>} : memref<1x2x32xf32, #tpu.memory_space<vmem>>, vector<1x2x32xf32>,
      %c0_32 = arith.constant 0 : index
      %c0_33 = arith.constant 0 : index
      %31 = vector.load %arg10[%c0_32, %c0_33] : memref<2x32xf32, #tpu.memory_space<vmem>>, vector<2x32xf32>
      %c0_34 = arith.constant 0 : index
      %c0_35 = arith.constant 0 : index
      %c0_36 = arith.constant 0 : index
      %32 = vector.load %arg6[%c0_34, %c0_35, %c0_36] : memref<1x2x32xf32, #tpu.memory_space<vmem>>, vector<1x2x32xf32>
      %33 = vector.shape_cast %32 : vector<1x2x32xf32> to vector<2x32xf32>
      %34 = vector.shape_cast %31 : vector<2x32xf32> to vector<1x2x32xf32>
      tpu.vector_store %arg6[%c0_34, %c0_35, %c0_36], %34 {strides = array<i32>} : memref<1x2x32xf32, #tpu.memory_space<vmem>>, vector<1x2x32xf32>,
      %c0_37 = arith.constant 0 : index
      %c0_38 = arith.constant 0 : index
      %c0_39 = arith.constant 0 : index
      %35 = vector.load %arg11[%c0_37, %c0_38, %c0_39] : memref<2x32x1xf32, #tpu.memory_space<vmem>>, vector<2x32x1xf32>
      %36 = vector.shape_cast %35 : vector<2x32x1xf32> to vector<2x32xf32>
      %c0_40 = arith.constant 0 : index
      %c0_41 = arith.constant 0 : index
      %c0_42 = arith.constant 0 : index
      %37 = vector.load %arg7[%c0_40, %c0_41, %c0_42] : memref<1x2x32xf32, #tpu.memory_space<vmem>>, vector<1x2x32xf32>
      %38 = vector.shape_cast %37 : vector<1x2x32xf32> to vector<2x32xf32>
      %39 = vector.shape_cast %36 : vector<2x32xf32> to vector<1x2x32xf32>
      tpu.vector_store %arg7[%c0_40, %c0_41, %c0_42], %39 {strides = array<i32>} : memref<1x2x32xf32, #tpu.memory_space<vmem>>, vector<1x2x32xf32>,
    } else {
    }
    return
  }
  func.func @transform_0(%arg0: i32, %arg1: i32, %arg2: i32) -> (i32, i32, i32) {
    %c1_i32 = arith.constant 1 : i32
    %0 = arith.muli %arg0, %c1_i32 : i32
    %1 = arith.addi %0, %arg2 : i32
    %c0_i32 = arith.constant 0 : i32
    %c0_i32_0 = arith.constant 0 : i32
    return %arg1, %c0_i32, %1 : i32, i32, i32
  }
  func.func @transform_1(%arg0: i32, %arg1: i32, %arg2: i32) -> (i32, i32, i32) {
    %c0_i32 = arith.constant 0 : i32
    %c0_i32_0 = arith.constant 0 : i32
    return %arg0, %arg1, %c0_i32 : i32, i32, i32
  }
  func.func @transform_2(%arg0: i32, %arg1: i32, %arg2: i32) -> (i32, i32, i32) {
    %c0_i32 = arith.constant 0 : i32
    %c0_i32_0 = arith.constant 0 : i32
    return %arg0, %arg1, %c0_i32 : i32, i32, i32
  }
  func.func @transform_3(%arg0: i32, %arg1: i32, %arg2: i32) -> (i32, i32, i32) {
    %c0_i32 = arith.constant 0 : i32
    %c0_i32_0 = arith.constant 0 : i32
    return %arg0, %arg1, %c0_i32 : i32, i32, i32
  }
  func.func @transform_4(%arg0: i32, %arg1: i32, %arg2: i32) -> (i32, i32, i32) {
    %c0_i32 = arith.constant 0 : i32
    %c0_i32_0 = arith.constant 0 : i32
    return %arg0, %arg1, %c0_i32 : i32, i32, i32
  }
}

</mosaic_0001>

<llo_original>
// kernel: tpu_custom_call.1
$region0: #{tpu_custom_call.1}
  #allocation0 [shape = 'u32[]', space=smem, size = 0x4, offset = 0x4, fixed_abs, tag = 'smem constant byte address 0x4 - core index']
  #allocation1 [shape = 'u32[144,128]{1,0:T(1,128)}', space=vmem, size = 0x12000, scoped, tag = 'internal scratch']
  #allocation2 [shape = 'f32[2,32]{1,0:T(2,128)}', space=vmem, size = 0x400, scoped, tag = 'scratch operand']
  #allocation3 [shape = 'f32[2,32]{1,0:T(2,128)}', space=vmem, size = 0x400, scoped, tag = 'scratch operand']
  #allocation4 [shape = 'f32[2,32]{1,0:T(2,128)}', space=vmem, size = 0x400, scoped, tag = 'scratch operand']
  #allocation5 [shape = 'f32[2,32,1]{2,1,0:T(8,128)}', space=vmem, size = 0x8000, scoped, tag = 'scratch operand']
  %s0 = inlined_call_operand.hbm [shape: f32[2,32,256], index: 0, kind: input, shape index: {}]
  %s1 = inlined_call_operand.hbm [shape: f32[2,2,32], index: 1, kind: output, shape index: {0}]
  %s2 = inlined_call_operand.hbm [shape: f32[2,2,32], index: 2, kind: output, shape index: {1}]
  %s3 = inlined_call_operand.hbm [shape: f32[2,2,32], index: 3, kind: output, shape index: {2}]
  %s4 = inlined_call_operand.hbm [shape: f32[2,2,32], index: 4, kind: output, shape index: {3}]
  %5 = xla_tuple %s1, %s2, %s3, %s4
  %s6 = sld [smem:[#allocation0]]
  $region73: #{tpu_custom_call.1} parent=0
    _
  %s8 = ssub.s32 1, %s6
  %s9 = scalar_select 0, %s8, %s6
  $region1: #{tpu_custom_call.1} parent=0
    #allocation6 [shape = 'u8[65536]{0}', space=vmem, size = 0x10000, scoped, tag = 'input window, operand 0']
    #allocation7 [shape = 's32[2]{0}', space=sflag, size = 0x8, scoped, tag = 'scoped memory for tpu_custom_call.1']
    #allocation8 [shape = 's32[2]{0}', space=sflag, size = 0x8, scoped, tag = 'scoped memory for tpu_custom_call.1']
    #allocation9 [shape = 'u8[2048]{0}', space=vmem, size = 0x800, scoped, tag = 'output window, operand 0']
    #allocation10 [shape = 'u8[2048]{0}', space=vmem, size = 0x800, scoped, tag = 'output window, operand 1']
    #allocation11 [shape = 's32[2]{0}', space=sflag, size = 0x8, scoped, tag = 'scoped memory for tpu_custom_call.1']
    #allocation12 [shape = 'u8[2048]{0}', space=vmem, size = 0x800, scoped, tag = 'output window, operand 2']
    #allocation13 [shape = 'u8[2048]{0}', space=vmem, size = 0x800, scoped, tag = 'output window, operand 3']
    #allocation14 [shape = 's32[2]{0}', space=sflag, size = 0x8, scoped, tag = 'scoped memory for tpu_custom_call.1']
    %10 = vsyncpa [#allocation7], 0
    %s11 = scalar_lea.sflag [#allocation7], 1
    %12 = vsyncpa %s11, 0
    %13 = vsyncpa [#allocation8], 0
    %s14 = scalar_lea.sflag [#allocation8], 1
    %15 = vsyncpa %s14, 0
    %16 = vsyncpa [#allocation11], 0
    %s17 = scalar_lea.sflag [#allocation11], 1
    %18 = vsyncpa %s17, 0
    %19 = vsyncpa [#allocation14], 0
    %s20 = scalar_lea.sflag [#allocation14], 1
    %21 = vsyncpa %s20, 0
    loop: start=0, step=1, limit=4
    $region2: #{tpu_custom_call.1} parent=1 // loop_pre_header
      _
    $region3: #{tpu_custom_call.1} parent=1 // loop_header
      %s23 = sphi 0, %s27
      %p24 = scmp.ge.s32.totalorder %s23, 4
      %s30 = sphi 0, %s49
      %s31 = sphi 0, %s45
      %s32 = sphi 0, %s41
      %s33 = sphi 0, %s30
      %s34 = sphi 0, %s31
      %s35 = sphi 0, %s32
      %s36 = sphi 0, %s33
      %s37 = sphi 0, %s34
      %s38 = sphi 0, %s35
      %s56 = sphi 0, %s58
      %s59 = sphi 0, %s56
      %s60 = sphi 0, %s59
      %s76 = sphi 0, %s60
      %s84 = sphi 0, %s86
      %s87 = sphi 0, %s84
      %s88 = sphi 0, %s87
      %s104 = sphi 0, %s88
      %s112 = sphi 0, %s114
      %s115 = sphi 0, %s112
      %s116 = sphi 0, %s115
      %s132 = sphi 0, %s116
      %s140 = sphi 0, %s142
      %s143 = sphi 0, %s140
      %s144 = sphi 0, %s143
      %s160 = sphi 0, %s144
      %s168 = sphi 0, %s170
      %s171 = sphi 0, %s168
      %s172 = sphi 0, %s171
      %s188 = sphi 0, %s172
    $region4: #{tpu_custom_call.1} parent=1 // loop_header_branch
      %26 = sbr.rel (%p24) target = $region8
    $region5: #{tpu_custom_call.1} parent=1 // loop_body
      %s28 = ssub.s32 %s23, 1
      %s29 = ssub.s32 %s23, 2
      %s39 = sadd.s32 1, %s32
      %p40 = scmp.ge.s32.totalorder %s39, 1
      %s41 = scalar_select %p40, 0, %s39
      %s42 = sadd.s32 1, %s31
      %s43 = scalar_select %p40, %s42, %s31
      %p44 = scmp.ge.s32.totalorder %s43, 1
      %s45 = scalar_select %p44, 0, %s43
      %s46 = sadd.s32 1, %s30
      %s47 = scalar_select %p44, %s46, %s30
      %p48 = scmp.ge.s32.totalorder %s47, 2
      %s49 = scalar_select %p48, 0, %s47
      %s50 = sadd.s32 %s30, %s32
      %s51 = sadd.s32 %s49, %s41
      %s52 = ssub.s32 %s31, %s45
      %s53 = ssub.s32 %s50, %s51
      %s54 = sor.u32 %s52, %s53
      %p55 = scmp.eq.s32.totalorder %s54, 0
      %s57 = sadd.s32 %s56, 1
      %s58 = scalar_select %p55, %s56, %s57
      %p61 = pneg %p55
      %p62 = scmp.eq.s32.totalorder %s23, 1
      %p63 = por %p61, %p62
      %p64 = scmp.ne.s32.totalorder %s56, %s59
      %p65 = scmp.eq.s32.totalorder %s23, 0
      %p66 = por %p64, %p65
      %p67 = scmp.ne.s32.totalorder %s56, %s59
      %p68 = scmp.eq.s32.totalorder %s28, 1
      %p69 = por %p67, %p68
      %p70 = scmp.ne.s32.totalorder %s59, %s60
      %p71 = scmp.eq.s32.totalorder %s28, 0
      %p72 = por %p70, %p71
      %p73 = scmp.ne.s32.totalorder %s59, %s60
      %p74 = scmp.eq.s32.totalorder %s29, 1
      %p75 = por %p73, %p74
      %p77 = scmp.ne.s32.totalorder %s60, %s76
      %p78 = scmp.eq.s32.totalorder %s29, 0
      %p79 = por %p77, %p78
      %s80 = ssub.s32 %s30, %s49
      %s81 = ssub.s32 %s31, %s45
      %s82 = sor.u32 %s80, %s81
      %p83 = scmp.eq.s32.totalorder %s82, 0
      %s85 = sadd.s32 %s84, 1
      %s86 = scalar_select %p83, %s84, %s85
      %p89 = pneg %p83
      %p90 = scmp.eq.s32.totalorder %s23, 1
      %p91 = por %p89, %p90
      %p92 = scmp.ne.s32.totalorder %s84, %s87
      %p93 = scmp.eq.s32.totalorder %s23, 0
      %p94 = por %p92, %p93
      %p95 = scmp.ne.s32.totalorder %s84, %s87
      %p96 = scmp.eq.s32.totalorder %s28, 1
      %p97 = por %p95, %p96
      %p98 = scmp.ne.s32.totalorder %s87, %s88
      %p99 = scmp.eq.s32.totalorder %s28, 0
      %p100 = por %p98, %p99
      %p101 = scmp.ne.s32.totalorder %s87, %s88
      %p102 = scmp.eq.s32.totalorder %s29, 1
      %p103 = por %p101, %p102
      %p105 = scmp.ne.s32.totalorder %s88, %s104
      %p106 = scmp.eq.s32.totalorder %s29, 0
      %p107 = por %p105, %p106
      %s108 = ssub.s32 %s30, %s49
      %s109 = ssub.s32 %s31, %s45
      %s110 = sor.u32 %s108, %s109
      %p111 = scmp.eq.s32.totalorder %s110, 0
      %s113 = sadd.s32 %s112, 1
      %s114 = scalar_select %p111, %s112, %s113
      %p117 = pneg %p111
      %p118 = scmp.eq.s32.totalorder %s23, 1
      %p119 = por %p117, %p118
      %p120 = scmp.ne.s32.totalorder %s112, %s115
      %p121 = scmp.eq.s32.totalorder %s23, 0
      %p122 = por %p120, %p121
      %p123 = scmp.ne.s32.totalorder %s112, %s115
      %p124 = scmp.eq.s32.totalorder %s28, 1
      %p125 = por %p123, %p124
      %p126 = scmp.ne.s32.totalorder %s115, %s116
      %p127 = scmp.eq.s32.totalorder %s28, 0
      %p128 = por %p126, %p127
      %p129 = scmp.ne.s32.totalorder %s115, %s116
      %p130 = scmp.eq.s32.totalorder %s29, 1
      %p131 = por %p129, %p130
      %p133 = scmp.ne.s32.totalorder %s116, %s132
      %p134 = scmp.eq.s32.totalorder %s29, 0
      %p135 = por %p133, %p134
      %s136 = ssub.s32 %s30, %s49
      %s137 = ssub.s32 %s31, %s45
      %s138 = sor.u32 %s136, %s137
      %p139 = scmp.eq.s32.totalorder %s138, 0
      %s141 = sadd.s32 %s140, 1
      %s142 = scalar_select %p139, %s140, %s141
      %p145 = pneg %p139
      %p146 = scmp.eq.s32.totalorder %s23, 1
      %p147 = por %p145, %p146
      %p148 = scmp.ne.s32.totalorder %s140, %s143
      %p149 = scmp.eq.s32.totalorder %s23, 0
      %p150 = por %p148, %p149
      %p151 = scmp.ne.s32.totalorder %s140, %s143
      %p152 = scmp.eq.s32.totalorder %s28, 1
      %p153 = por %p151, %p152
      %p154 = scmp.ne.s32.totalorder %s143, %s144
      %p155 = scmp.eq.s32.totalorder %s28, 0
      %p156 = por %p154, %p155
      %p157 = scmp.ne.s32.totalorder %s143, %s144
      %p158 = scmp.eq.s32.totalorder %s29, 1
      %p159 = por %p157, %p158
      %p161 = scmp.ne.s32.totalorder %s144, %s160
      %p162 = scmp.eq.s32.totalorder %s29, 0
      %p163 = por %p161, %p162
      %s164 = ssub.s32 %s30, %s49
      %s165 = ssub.s32 %s31, %s45
      %s166 = sor.u32 %s164, %s165
      %p167 = scmp.eq.s32.totalorder %s166, 0
      %s169 = sadd.s32 %s168, 1
      %s170 = scalar_select %p167, %s168, %s169
      %p173 = pneg %p167
      %p174 = scmp.eq.s32.totalorder %s23, 1
      %p175 = por %p173, %p174
      %p176 = scmp.ne.s32.totalorder %s168, %s171
      %p177 = scmp.eq.s32.totalorder %s23, 0
      %p178 = por %p176, %p177
      %p179 = scmp.ne.s32.totalorder %s168, %s171
      %p180 = scmp.eq.s32.totalorder %s28, 1
      %p181 = por %p179, %p180
      %p182 = scmp.ne.s32.totalorder %s171, %s172
      %p183 = scmp.eq.s32.totalorder %s28, 0
      %p184 = por %p182, %p183
      %p185 = scmp.ne.s32.totalorder %s171, %s172
      %p186 = scmp.eq.s32.totalorder %s29, 1
      %p187 = por %p185, %p186
      %p189 = scmp.ne.s32.totalorder %s172, %s188
      %p190 = scmp.eq.s32.totalorder %s29, 0
      %p191 = por %p189, %p190
      %p192 = scmp.le.s32.totalorder 1, %s23
      %p193 = scmp.lt.s32.totalorder %s23, 3
      %p194 = pnand %p192, %p193
      %p195 = pneg %p194
      // Predicated region
      $region9: #{tpu_custom_call.1} parent=5 // pred_check
        _
      $region10: #{tpu_custom_call.1} parent=5 // pred_check_branch
        %197 = sbr.rel (%p194) target = $region12
      $region11: #{tpu_custom_call.1} parent=5 // pred_region
        %s198 = ssub.s32 %s23, 1
      $region12: #{tpu_custom_call.1} parent=5 // pred_fallthru
        _
      %p199 = scmp.lt.s32.totalorder %s23, 2
      // Predicated region
      $region13: #{tpu_custom_call.1} parent=5 // pred_check
        %p200 = pneg %p199
      $region14: #{tpu_custom_call.1} parent=5 // pred_check_branch
        %202 = sbr.rel (%p200) target = $region16
      $region15: #{tpu_custom_call.1} parent=5 // pred_region
        // Predicated region
        $region17: #{tpu_custom_call.1} parent=15 // pred_check
          %p203 = pneg %p66
        $region18: #{tpu_custom_call.1} parent=15 // pred_check_branch
          %205 = sbr.rel (%p203) target = $region20
        $region19: #{tpu_custom_call.1} parent=15 // pred_region
          %s206 = sand.u32 %s56, 1
          %s207 = scalar_lea.sflag [#allocation7], %s206
          %s208 = sand.u32 %s56, 1
          %s209 = smul.addr %s208, 64
          %s210 = scalar_lea.vmem [#allocation6], %s209
          %s211 = sadd.s32 %s30, %s32
          %s212 = smul.u32 2, %s31
          %s214 = ssub.s32 1024, 1024
          %215 = vsyncadd %s207, %s214
          %s216 = smul.addr %s212, 8
          %s217 = sadd.s32 %s211, %s216
          %s218 = smul.addr %s217, 128
          %s219 = scalar_lea.hbm %s0, %s218
          %s220 = sshll.u32 %s210, 4
          %s221 = int_to_ptr.vmem [resolvable:$true] %s220
          %226 = dma.hbm_to_vmem [thread:$0]  %s219, 1024, %s221, %s207, 256, 128, 8
        $region20: #{tpu_custom_call.1} parent=15 // pred_fallthru
          _
      $region16: #{tpu_custom_call.1} parent=5 // pred_fallthru
        _
      %p227 = scmp.le.s32.totalorder 1, %s23
      %p228 = scmp.lt.s32.totalorder %s23, 3
      %p229 = pnand %p227, %p228
      %p230 = pneg %p229
      // Predicated region
      $region21: #{tpu_custom_call.1} parent=5 // pred_check
        _
      $region22: #{tpu_custom_call.1} parent=5 // pred_check_branch
        %232 = sbr.rel (%p229) target = $region24
      $region23: #{tpu_custom_call.1} parent=5 // pred_region
        %s233 = ssub.s32 %s23, 1
        %s234 = sand.u32 %s59, 1
        %s235 = scalar_lea.sflag [#allocation7], %s234
        %s236 = sand.u32 %s59, 1
        %s237 = smul.addr %s236, 64
        %s238 = scalar_lea.vmem [#allocation6], %s237
        // Predicated region
        $region25: #{tpu_custom_call.1} parent=23 // pred_check
          %p239 = pneg %p72
        $region26: #{tpu_custom_call.1} parent=23 // pred_check_branch
          %241 = sbr.rel (%p239) target = $region28
        $region27: #{tpu_custom_call.1} parent=23 // pred_region
          %242 = dma.done %s235, 1024
        $region28: #{tpu_custom_call.1} parent=23 // pred_fallthru
          _
        %s243 = sand.u32 %s59, 1
        %s244 = scalar_lea.sflag [#allocation7], %s243
        %s245 = sand.u32 %s59, 1
        %s246 = smul.addr %s245, 64
        %s247 = scalar_lea.vmem [#allocation6], %s246
        %p248 = pneg %p72
        %p249 = pneg %p69
        %p250 = pneg %p100
        %p251 = pneg %p97
        %s252 = sand.u32 %s87, 1
        %s253 = scalar_lea.sflag [#allocation8], %s252
        %s254 = sand.u32 %s87, 1
        %s255 = smul.addr %s254, 2
        %s256 = scalar_lea.vmem [#allocation9], %s255
        %p257 = pneg %p128
        %p258 = pneg %p125
        %s259 = sand.u32 %s28, 1
        %s260 = scalar_lea.sflag [#allocation11], %s259
        %s261 = sand.u32 %s115, 1
        %s262 = smul.addr %s261, 2
        %s263 = scalar_lea.vmem [#allocation10], %s262
        %p264 = pneg %p156
        %p265 = pneg %p153
        %s266 = sand.u32 %s28, 1
        %s267 = scalar_lea.sflag [#allocation11], %s266
        %s268 = sand.u32 %s143, 1
        %s269 = smul.addr %s268, 2
        %s270 = scalar_lea.vmem [#allocation12], %s269
        %p271 = pneg %p184
        %p272 = pneg %p181
        %s273 = sand.u32 %s171, 1
        %s274 = scalar_lea.sflag [#allocation14], %s273
        %s275 = sand.u32 %s171, 1
        %s276 = smul.addr %s275, 2
        %s277 = scalar_lea.vmem [#allocation13], %s276
        %s278 = sadd.s32 %s33, %s35
        %s279 = smul.u32 2, %s34
        %p280 = scmp.eq.s32.totalorder %s35, 0
        // Predicated region
        $region29: #{tpu_custom_call.1} parent=23 // pred_check
          %p281 = pneg %p280
        $region30: #{tpu_custom_call.1} parent=23 // pred_check_branch
          %283 = sbr.rel (%p281) target = $region32
        $region31: #{tpu_custom_call.1} parent=23 // pred_region
          %v284 = vld [vmem:[%s238] sm:$0xff]
          %v285 = vld [vmem:[%s238 + $0x8] sm:$0xff]
          %v286 = vld [vmem:[%s238 + $0x10] sm:$0xff]
          %v287 = vld [vmem:[%s238 + $0x18] sm:$0xff]
          %v288 = vld [vmem:[%s238 + $0x20] sm:$0xff]
          %v289 = vld [vmem:[%s238 + $0x28] sm:$0xff]
          %v290 = vld [vmem:[%s238 + $0x30] sm:$0xff]
          %v291 = vld [vmem:[%s238 + $0x38] sm:$0xff]
          %vm292 = vcmask 7168
          %293 = vst.msk [vmem:[#allocation5] sm:$0xff] %vm292, %v284
          %294 = vst.msk [vmem:[#allocation5 + $0x8] sm:$0xff] %vm292, %v285
          %295 = vst.msk [vmem:[#allocation5 + $0x10] sm:$0xff] %vm292, %v286
          %296 = vst.msk [vmem:[#allocation5 + $0x18] sm:$0xff] %vm292, %v287
          %297 = vst.msk [vmem:[#allocation5 + $0x20] sm:$0xff] %vm292, %v288
          %298 = vst.msk [vmem:[#allocation5 + $0x28] sm:$0xff] %vm292, %v289
          %299 = vst.msk [vmem:[#allocation5 + $0x30] sm:$0xff] %vm292, %v290
          %300 = vst.msk [vmem:[#allocation5 + $0x38] sm:$0xff] %vm292, %v291
          %vm301 = vcmask 254976
          %302 = vst.msk [vmem:[#allocation2] sm:$0x3] %vm301, -inf
          %303 = vst.msk [vmem:[#allocation3] sm:$0x3] %vm301, 0.0
          %304 = vst.msk [vmem:[#allocation4] sm:$0x3] %vm301, 0.0
        $region32: #{tpu_custom_call.1} parent=23 // pred_fallthru
          _
        %v305 = vld [vmem:[%s238] sm:$0xff]
        %v306 = vld [vmem:[%s238 + $0x8] sm:$0xff]
        %v307 = vld [vmem:[%s238 + $0x10] sm:$0xff]
        %v308 = vld [vmem:[%s238 + $0x18] sm:$0xff]
        %v309 = vld [vmem:[%s238 + $0x20] sm:$0xff]
        %v310 = vld [vmem:[%s238 + $0x28] sm:$0xff]
        %v311 = vld [vmem:[%s238 + $0x30] sm:$0xff]
        %v312 = vld [vmem:[%s238 + $0x38] sm:$0xff]
        %v313 = vld [vmem:[#allocation5] sm:$0xff]
        %v314 = vld [vmem:[#allocation5 + $0x8] sm:$0xff]
        %v315 = vld [vmem:[#allocation5 + $0x10] sm:$0xff]
        %v316 = vld [vmem:[#allocation5 + $0x18] sm:$0xff]
        %v317 = vld [vmem:[#allocation5 + $0x20] sm:$0xff]
        %v318 = vld [vmem:[#allocation5 + $0x28] sm:$0xff]
        %v319 = vld [vmem:[#allocation5 + $0x30] sm:$0xff]
        %v320 = vld [vmem:[#allocation5 + $0x38] sm:$0xff]
        %322 = vset.pattern.permute.xlu0 0
        %323 = vperm.xlu0 %322, %v313
        %v324 = vpop.permute.xlu0 %323
        %327 = vset.pattern.permute.xlu0 0
        %328 = vperm.xlu0 %327, %v314
        %v329 = vpop.permute.xlu0 %328
        %332 = vset.pattern.permute.xlu0 0
        %333 = vperm.xlu0 %332, %v315
        %v334 = vpop.permute.xlu0 %333
        %337 = vset.pattern.permute.xlu0 0
        %338 = vperm.xlu0 %337, %v316
        %v339 = vpop.permute.xlu0 %338
        %342 = vset.pattern.permute.xlu0 0
        %343 = vperm.xlu0 %342, %v317
        %v344 = vpop.permute.xlu0 %343
        %347 = vset.pattern.permute.xlu0 0
        %348 = vperm.xlu0 %347, %v318
        %v349 = vpop.permute.xlu0 %348
        %352 = vset.pattern.permute.xlu0 0
        %353 = vperm.xlu0 %352, %v319
        %v354 = vpop.permute.xlu0 %353
        %357 = vset.pattern.permute.xlu0 0
        %358 = vperm.xlu0 %357, %v320
        %v359 = vpop.permute.xlu0 %358
        %v361 = vsub.f32 %v305, %v324
        %v362 = vsub.f32 %v306, %v329
        %v363 = vsub.f32 %v307, %v334
        %v364 = vsub.f32 %v308, %v339
        %v365 = vsub.f32 %v309, %v344
        %v366 = vsub.f32 %v310, %v349
        %v367 = vsub.f32 %v311, %v354
        %v368 = vsub.f32 %v312, %v359
        %v369 = vld [vmem:[#allocation2] sm:$0x3]
        %370 = vmax.xlane.f32.xlu0 %v305
        %v371 = vpop.xlane.xlu0 %370
        %372 = vmax.xlane.f32.xlu0 %v306
        %v373 = vpop.xlane.xlu0 %372
        %374 = vmax.xlane.f32.xlu0 %v307
        %v375 = vpop.xlane.xlu0 %374
        %376 = vmax.xlane.f32.xlu0 %v308
        %v377 = vpop.xlane.xlu0 %376
        %378 = vmax.xlane.f32.xlu0 %v309
        %v379 = vpop.xlane.xlu0 %378
        %380 = vmax.xlane.f32.xlu0 %v310
        %v381 = vpop.xlane.xlu0 %380
        %382 = vmax.xlane.f32.xlu0 %v311
        %v383 = vpop.xlane.xlu0 %382
        %384 = vmax.xlane.f32.xlu0 %v312
        %v385 = vpop.xlane.xlu0 %384
        %v394 = vlaneseq
        %v395 = vand.u32 %v394, 127
        %v396 = vlaneseq
        %v397 = vshrl.u32 %v396, 7
        %v398 = vsub.s32 %v395, %v397
        %v399 = vrot.slane %v371, %v398
        %v400 = vadd.s32 %v395, 4294967288
        %v401 = vlaneseq
        %v402 = vshrl.u32 %v401, 7
        %v403 = vsub.s32 %v400, %v402
        %v404 = vrot.slane %v373, %v403
        %vm405 = vcmask 130112
        %v406 = vsel %vm405, %v404, %v399
        %v407 = vadd.s32 %v395, 4294967280
        %v408 = vlaneseq
        %v409 = vshrl.u32 %v408, 7
        %v410 = vsub.s32 %v407, %v409
        %v411 = vrot.slane %v375, %v410
        %vm412 = vcmask 195712
        %v413 = vsel %vm412, %v411, %v406
        %v414 = vadd.s32 %v395, 4294967272
        %v415 = vlaneseq
        %v416 = vshrl.u32 %v415, 7
        %v417 = vsub.s32 %v414, %v416
        %v418 = vrot.slane %v377, %v417
        %vm419 = vcmask 261312
        %v420 = vsel %vm419, %v418, %v413
        %v421 = vlaneseq
        %v422 = vshrl.u32 %v421, 7
        %v423 = vsub.s32 %v395, %v422
        %v424 = vrot.slane %v379, %v423
        %v425 = vlaneseq
        %v426 = vshrl.u32 %v425, 7
        %v427 = vsub.s32 %v400, %v426
        %v428 = vrot.slane %v381, %v427
        %v429 = vsel %vm405, %v428, %v424
        %v430 = vlaneseq
        %v431 = vshrl.u32 %v430, 7
        %v432 = vsub.s32 %v407, %v431
        %v433 = vrot.slane %v383, %v432
        %v434 = vsel %vm412, %v433, %v429
        %v435 = vlaneseq
        %v436 = vshrl.u32 %v435, 7
        %v437 = vsub.s32 %v414, %v436
        %v438 = vrot.slane %v385, %v437
        %v439 = vsel %vm419, %v438, %v434
        %vm440 = vcmask 1041409
        %v441 = vsel %vm440, %v439, %v420
        %v443 = vmax.f32 %v369, %v441
        %vm444 = vcmask 254976
        %445 = vst.msk [vmem:[#allocation2] sm:$0x3] %vm444, %v443
        %v446 = vld [vmem:[#allocation3] sm:$0x3]
        %447 = vadd.xlane.f32.xlu0 %v361
        %v448 = vpop.xlane.xlu0 %447
        %449 = vadd.xlane.f32.xlu0 %v362
        %v450 = vpop.xlane.xlu0 %449
        %451 = vadd.xlane.f32.xlu0 %v363
        %v452 = vpop.xlane.xlu0 %451
        %453 = vadd.xlane.f32.xlu0 %v364
        %v454 = vpop.xlane.xlu0 %453
        %455 = vadd.xlane.f32.xlu0 %v365
        %v456 = vpop.xlane.xlu0 %455
        %457 = vadd.xlane.f32.xlu0 %v366
        %v458 = vpop.xlane.xlu0 %457
        %459 = vadd.xlane.f32.xlu0 %v367
        %v460 = vpop.xlane.xlu0 %459
        %461 = vadd.xlane.f32.xlu0 %v368
        %v462 = vpop.xlane.xlu0 %461
        %v471 = vlaneseq
        %v472 = vshrl.u32 %v471, 7
        %v473 = vsub.s32 %v395, %v472
        %v474 = vrot.slane %v448, %v473
        %v475 = vlaneseq
        %v476 = vshrl.u32 %v475, 7
        %v477 = vsub.s32 %v400, %v476
        %v478 = vrot.slane %v450, %v477
        %v479 = vsel %vm405, %v478, %v474
        %v480 = vlaneseq
        %v481 = vshrl.u32 %v480, 7
        %v482 = vsub.s32 %v407, %v481
        %v483 = vrot.slane %v452, %v482
        %v484 = vsel %vm412, %v483, %v479
        %v485 = vlaneseq
        %v486 = vshrl.u32 %v485, 7
        %v487 = vsub.s32 %v414, %v486
        %v488 = vrot.slane %v454, %v487
        %v489 = vsel %vm419, %v488, %v484
        %v490 = vlaneseq
        %v491 = vshrl.u32 %v490, 7
        %v492 = vsub.s32 %v395, %v491
        %v493 = vrot.slane %v456, %v492
        %v494 = vlaneseq
        %v495 = vshrl.u32 %v494, 7
        %v496 = vsub.s32 %v400, %v495
        %v497 = vrot.slane %v458, %v496
        %v498 = vsel %vm405, %v497, %v493
        %v499 = vlaneseq
        %v500 = vshrl.u32 %v499, 7
        %v501 = vsub.s32 %v407, %v500
        %v502 = vrot.slane %v460, %v501
        %v503 = vsel %vm412, %v502, %v498
        %v504 = vlaneseq
        %v505 = vshrl.u32 %v504, 7
        %v506 = vsub.s32 %v414, %v505
        %v507 = vrot.slane %v462, %v506
        %v508 = vsel %vm419, %v507, %v503
        %v509 = vsel %vm440, %v508, %v489
        %v511 = vadd.f32 %v446, %v509
        %512 = vst.msk [vmem:[#allocation3] sm:$0x3] %vm444, %v511
        %v513 = vld [vmem:[#allocation4] sm:$0x3]
        %v514 = vmul.f32 %v361, %v361
        %v515 = vmul.f32 %v362, %v362
        %v516 = vmul.f32 %v363, %v363
        %v517 = vmul.f32 %v364, %v364
        %v518 = vmul.f32 %v365, %v365
        %v519 = vmul.f32 %v366, %v366
        %v520 = vmul.f32 %v367, %v367
        %v521 = vmul.f32 %v368, %v368
        %522 = vadd.xlane.f32.xlu0 %v514
        %v523 = vpop.xlane.xlu0 %522
        %524 = vadd.xlane.f32.xlu0 %v515
        %v525 = vpop.xlane.xlu0 %524
        %526 = vadd.xlane.f32.xlu0 %v516
        %v527 = vpop.xlane.xlu0 %526
        %528 = vadd.xlane.f32.xlu0 %v517
        %v529 = vpop.xlane.xlu0 %528
        %530 = vadd.xlane.f32.xlu0 %v518
        %v531 = vpop.xlane.xlu0 %530
        %532 = vadd.xlane.f32.xlu0 %v519
        %v533 = vpop.xlane.xlu0 %532
        %534 = vadd.xlane.f32.xlu0 %v520
        %v535 = vpop.xlane.xlu0 %534
        %536 = vadd.xlane.f32.xlu0 %v521
        %v537 = vpop.xlane.xlu0 %536
        %v546 = vlaneseq
        %v547 = vshrl.u32 %v546, 7
        %v548 = vsub.s32 %v395, %v547
        %v549 = vrot.slane %v523, %v548
        %v550 = vlaneseq
        %v551 = vshrl.u32 %v550, 7
        %v552 = vsub.s32 %v400, %v551
        %v553 = vrot.slane %v525, %v552
        %v554 = vsel %vm405, %v553, %v549
        %v555 = vlaneseq
        %v556 = vshrl.u32 %v555, 7
        %v557 = vsub.s32 %v407, %v556
        %v558 = vrot.slane %v527, %v557
        %v559 = vsel %vm412, %v558, %v554
        %v560 = vlaneseq
        %v561 = vshrl.u32 %v560, 7
        %v562 = vsub.s32 %v414, %v561
        %v563 = vrot.slane %v529, %v562
        %v564 = vsel %vm419, %v563, %v559
        %v565 = vlaneseq
        %v566 = vshrl.u32 %v565, 7
        %v567 = vsub.s32 %v395, %v566
        %v568 = vrot.slane %v531, %v567
        %v569 = vlaneseq
        %v570 = vshrl.u32 %v569, 7
        %v571 = vsub.s32 %v400, %v570
        %v572 = vrot.slane %v533, %v571
        %v573 = vsel %vm405, %v572, %v568
        %v574 = vlaneseq
        %v575 = vshrl.u32 %v574, 7
        %v576 = vsub.s32 %v407, %v575
        %v577 = vrot.slane %v535, %v576
        %v578 = vsel %vm412, %v577, %v573
        %v579 = vlaneseq
        %v580 = vshrl.u32 %v579, 7
        %v581 = vsub.s32 %v414, %v580
        %v582 = vrot.slane %v537, %v581
        %v583 = vsel %vm419, %v582, %v578
        %v584 = vsel %vm440, %v583, %v564
        %v586 = vadd.f32 %v513, %v584
        %587 = vst.msk [vmem:[#allocation4] sm:$0x3] %vm444, %v586
        // Predicated region
        $region33: #{tpu_custom_call.1} parent=23 // pred_check
          %p588 = pneg %p280
        $region34: #{tpu_custom_call.1} parent=23 // pred_check_branch
          %590 = sbr.rel (%p588) target = $region36
        $region35: #{tpu_custom_call.1} parent=23 // pred_region
          %v591 = vld [vmem:[#allocation2] sm:$0x3]
          %592 = vst.msk [vmem:[%s256] sm:$0x3] %vm444, %v591
          %v593 = vld [vmem:[#allocation3] sm:$0x3]
          %594 = vst.msk [vmem:[%s263] sm:$0x3] %vm444, %v593
          %v595 = vld [vmem:[#allocation4] sm:$0x3]
          %596 = vst.msk [vmem:[%s270] sm:$0x3] %vm444, %v595
          %v597 = vld [vmem:[#allocation5] sm:$0xff]
          %v598 = vld [vmem:[#allocation5 + $0x8] sm:$0xff]
          %v599 = vld [vmem:[#allocation5 + $0x10] sm:$0xff]
          %v600 = vld [vmem:[#allocation5 + $0x18] sm:$0xff]
          %v601 = vld [vmem:[#allocation5 + $0x20] sm:$0xff]
          %v602 = vld [vmem:[#allocation5 + $0x28] sm:$0xff]
          %v603 = vld [vmem:[#allocation5 + $0x30] sm:$0xff]
          %v604 = vld [vmem:[#allocation5 + $0x38] sm:$0xff]
          %613 = vset.pattern.permute.xlu0 0
          %614 = vperm.xlu0 %613, %v597
          %v615 = vpop.permute.xlu0 %614
          %616 = vset.pattern.permute.xlu0 0
          %617 = vperm.xlu0 %616, %v598
          %v618 = vpop.permute.xlu0 %617
          %619 = vset.pattern.permute.xlu0 0
          %620 = vperm.xlu0 %619, %v599
          %v621 = vpop.permute.xlu0 %620
          %622 = vset.pattern.permute.xlu0 0
          %623 = vperm.xlu0 %622, %v600
          %v624 = vpop.permute.xlu0 %623
          %625 = vset.pattern.permute.xlu0 0
          %626 = vperm.xlu0 %625, %v601
          %v627 = vpop.permute.xlu0 %626
          %628 = vset.pattern.permute.xlu0 0
          %629 = vperm.xlu0 %628, %v602
          %v630 = vpop.permute.xlu0 %629
          %631 = vset.pattern.permute.xlu0 0
          %632 = vperm.xlu0 %631, %v603
          %v633 = vpop.permute.xlu0 %632
          %634 = vset.pattern.permute.xlu0 0
          %635 = vperm.xlu0 %634, %v604
          %v636 = vpop.permute.xlu0 %635
          %v637 = vlaneseq
          %v638 = vshrl.u32 %v637, 7
          %v639 = vsub.s32 %v395, %v638
          %v640 = vrot.slane %v615, %v639
          %v641 = vlaneseq
          %v642 = vshrl.u32 %v641, 7
          %v643 = vsub.s32 %v400, %v642
          %v644 = vrot.slane %v618, %v643
          %v645 = vsel %vm405, %v644, %v640
          %v646 = vlaneseq
          %v647 = vshrl.u32 %v646, 7
          %v648 = vsub.s32 %v407, %v647
          %v649 = vrot.slane %v621, %v648
          %v650 = vsel %vm412, %v649, %v645
          %v651 = vlaneseq
          %v652 = vshrl.u32 %v651, 7
          %v653 = vsub.s32 %v414, %v652
          %v654 = vrot.slane %v624, %v653
          %v655 = vsel %vm419, %v654, %v650
          %v656 = vlaneseq
          %v657 = vshrl.u32 %v656, 7
          %v658 = vsub.s32 %v395, %v657
          %v659 = vrot.slane %v627, %v658
          %v660 = vlaneseq
          %v661 = vshrl.u32 %v660, 7
          %v662 = vsub.s32 %v400, %v661
          %v663 = vrot.slane %v630, %v662
          %v664 = vsel %vm405, %v663, %v659
          %v665 = vlaneseq
          %v666 = vshrl.u32 %v665, 7
          %v667 = vsub.s32 %v407, %v666
          %v668 = vrot.slane %v633, %v667
          %v669 = vsel %vm412, %v668, %v664
          %v670 = vlaneseq
          %v671 = vshrl.u32 %v670, 7
          %v672 = vsub.s32 %v414, %v671
          %v673 = vrot.slane %v636, %v672
          %v674 = vsel %vm419, %v673, %v669
          %v675 = vsel %vm440, %v674, %v655
          %677 = vst.msk [vmem:[%s277] sm:$0x3] %vm444, %v675
        $region36: #{tpu_custom_call.1} parent=23 // pred_fallthru
          _
        %s678 = sand.u32 %s87, 1
        %s679 = scalar_lea.sflag [#allocation8], %s678
        %s680 = sand.u32 %s87, 1
        %s681 = smul.addr %s680, 2
        %s682 = scalar_lea.vmem [#allocation9], %s681
        %s683 = sand.u32 %s28, 1
        %s684 = scalar_lea.sflag [#allocation11], %s683
        %s685 = sand.u32 %s115, 1
        %s686 = smul.addr %s685, 2
        %s687 = scalar_lea.vmem [#allocation10], %s686
        %s688 = sand.u32 %s28, 1
        %s689 = scalar_lea.sflag [#allocation11], %s688
        %s690 = sand.u32 %s143, 1
        %s691 = smul.addr %s690, 2
        %s692 = scalar_lea.vmem [#allocation12], %s691
        %s693 = sand.u32 %s171, 1
        %s694 = scalar_lea.sflag [#allocation14], %s693
        %s695 = sand.u32 %s171, 1
        %s696 = smul.addr %s695, 2
        %s697 = scalar_lea.vmem [#allocation13], %s696
        // Predicated region
        $region37: #{tpu_custom_call.1} parent=23 // pred_check
          %p698 = pneg %p97
        $region38: #{tpu_custom_call.1} parent=23 // pred_check_branch
          %700 = sbr.rel (%p698) target = $region40
        $region39: #{tpu_custom_call.1} parent=23 // pred_region
          %s702 = ssub.s32 32, 32
          %703 = vsyncadd %s679, %s702
          %s704 = sadd.s32 %s34, %s33
          %s705 = smul.addr %s704, 32
          %s706 = scalar_lea.hbm %s1, %s705
          %s708 = sshll.u32 %s682, 4
          %s709 = int_to_ptr.vmem [resolvable:$true] %s708
          %711 = dma.vmem_to_hbm [thread:$0]  %s709, 32, %s706, %s679
        $region40: #{tpu_custom_call.1} parent=23 // pred_fallthru
          _
        // Predicated region
        $region41: #{tpu_custom_call.1} parent=23 // pred_check
          %p712 = pneg %p125
        $region42: #{tpu_custom_call.1} parent=23 // pred_check_branch
          %714 = sbr.rel (%p712) target = $region44
        $region43: #{tpu_custom_call.1} parent=23 // pred_region
          %s716 = ssub.s32 32, 32
          %717 = vsyncadd %s684, %s716
          %s718 = sadd.s32 %s34, %s33
          %s719 = smul.addr %s718, 32
          %s720 = scalar_lea.hbm %s2, %s719
          %s722 = sshll.u32 %s687, 4
          %s723 = int_to_ptr.vmem [resolvable:$true] %s722
          %725 = dma.vmem_to_hbm [thread:$0]  %s723, 32, %s720, %s684
        $region44: #{tpu_custom_call.1} parent=23 // pred_fallthru
          _
        // Predicated region
        $region45: #{tpu_custom_call.1} parent=23 // pred_check
          %p726 = pneg %p153
        $region46: #{tpu_custom_call.1} parent=23 // pred_check_branch
          %728 = sbr.rel (%p726) target = $region48
        $region47: #{tpu_custom_call.1} parent=23 // pred_region
          %s730 = ssub.s32 32, 32
          %731 = vsyncadd %s689, %s730
          %s732 = sadd.s32 %s34, %s33
          %s733 = smul.addr %s732, 32
          %s734 = scalar_lea.hbm %s3, %s733
          %s736 = sshll.u32 %s692, 4
          %s737 = int_to_ptr.vmem [resolvable:$true] %s736
          %739 = dma.vmem_to_hbm [thread:$0]  %s737, 32, %s734, %s689
        $region48: #{tpu_custom_call.1} parent=23 // pred_fallthru
          _
        // Predicated region
        $region49: #{tpu_custom_call.1} parent=23 // pred_check
          %p740 = pneg %p181
        $region50: #{tpu_custom_call.1} parent=23 // pred_check_branch
          %742 = sbr.rel (%p740) target = $region52
        $region51: #{tpu_custom_call.1} parent=23 // pred_region
          %s744 = ssub.s32 32, 32
          %745 = vsyncadd %s694, %s744
          %s746 = sadd.s32 %s34, %s33
          %s747 = smul.addr %s746, 32
          %s748 = scalar_lea.hbm %s4, %s747
          %s750 = sshll.u32 %s697, 4
          %s751 = int_to_ptr.vmem [resolvable:$true] %s750
          %753 = dma.vmem_to_hbm [thread:$0]  %s751, 32, %s748, %s694
        $region52: #{tpu_custom_call.1} parent=23 // pred_fallthru
          _
      $region24: #{tpu_custom_call.1} parent=5 // pred_fallthru
        _
      %p754 = scmp.le.s32.totalorder 2, %s23
      // Predicated region
      $region53: #{tpu_custom_call.1} parent=5 // pred_check
        %p755 = pneg %p754
      $region54: #{tpu_custom_call.1} parent=5 // pred_check_branch
        %757 = sbr.rel (%p755) target = $region56
      $region55: #{tpu_custom_call.1} parent=5 // pred_region
        %s758 = ssub.s32 %s23, 2
        // Predicated region
        $region57: #{tpu_custom_call.1} parent=55 // pred_check
          %p759 = pneg %p103
        $region58: #{tpu_custom_call.1} parent=55 // pred_check_branch
          %761 = sbr.rel (%p759) target = $region60
        $region59: #{tpu_custom_call.1} parent=55 // pred_region
          %s762 = sand.u32 %s88, 1
          %s763 = scalar_lea.sflag [#allocation8], %s762
          %s764 = sand.u32 %s88, 1
          %s765 = smul.addr %s764, 2
          %s766 = scalar_lea.vmem [#allocation9], %s765
          %767 = dma.done %s763, 32
        $region60: #{tpu_custom_call.1} parent=55 // pred_fallthru
          _
        // Predicated region
        $region61: #{tpu_custom_call.1} parent=55 // pred_check
          %p768 = pneg %p131
        $region62: #{tpu_custom_call.1} parent=55 // pred_check_branch
          %770 = sbr.rel (%p768) target = $region64
        $region63: #{tpu_custom_call.1} parent=55 // pred_region
          %s771 = sand.u32 %s29, 1
          %s772 = scalar_lea.sflag [#allocation11], %s771
          %s773 = sand.u32 %s116, 1
          %s774 = smul.addr %s773, 2
          %s775 = scalar_lea.vmem [#allocation10], %s774
          %776 = dma.done %s772, 32
        $region64: #{tpu_custom_call.1} parent=55 // pred_fallthru
          _
        // Predicated region
        $region65: #{tpu_custom_call.1} parent=55 // pred_check
          %p777 = pneg %p159
        $region66: #{tpu_custom_call.1} parent=55 // pred_check_branch
          %779 = sbr.rel (%p777) target = $region68
        $region67: #{tpu_custom_call.1} parent=55 // pred_region
          %s780 = sand.u32 %s29, 1
          %s781 = scalar_lea.sflag [#allocation11], %s780
          %s782 = sand.u32 %s144, 1
          %s783 = smul.addr %s782, 2
          %s784 = scalar_lea.vmem [#allocation12], %s783
          %785 = dma.done %s781, 32
        $region68: #{tpu_custom_call.1} parent=55 // pred_fallthru
          _
        // Predicated region
        $region69: #{tpu_custom_call.1} parent=55 // pred_check
          %p786 = pneg %p187
        $region70: #{tpu_custom_call.1} parent=55 // pred_check_branch
          %788 = sbr.rel (%p786) target = $region72
        $region71: #{tpu_custom_call.1} parent=55 // pred_region
          %s789 = sand.u32 %s172, 1
          %s790 = scalar_lea.sflag [#allocation14], %s789
          %s791 = sand.u32 %s172, 1
          %s792 = smul.addr %s791, 2
          %s793 = scalar_lea.vmem [#allocation13], %s792
          %794 = dma.done %s790, 32
        $region72: #{tpu_custom_call.1} parent=55 // pred_fallthru
          _
      $region56: #{tpu_custom_call.1} parent=5 // pred_fallthru
        _
    $region6: #{tpu_custom_call.1} parent=1 // loop_footer
      %s27 = sadd.s32 1, %s23
    $region7: #{tpu_custom_call.1} parent=1 // loop_footer_branch
      %22 = sbr.rel target = $region3
    $region8: #{tpu_custom_call.1} parent=1 // loop_exit
      _
    %795 = vsyncpa [#allocation7], 1
    %s796 = scalar_lea.sflag [#allocation7], 1
    %797 = vsyncpa %s796, 1
    %798 = vsyncpa [#allocation8], 1
    %s799 = scalar_lea.sflag [#allocation8], 1
    %800 = vsyncpa %s799, 1
    %801 = vsyncpa [#allocation11], 1
    %s802 = scalar_lea.sflag [#allocation11], 1
    %803 = vsyncpa %s802, 1
    %804 = vsyncpa [#allocation14], 1
    %s805 = scalar_lea.sflag [#allocation14], 1
    %806 = vsyncpa %s805, 1

</llo_original>
